<compile_context>
chip_gen: v6e
topology: v6e:2x2x1
jax: 0.10.0
libtpu: 0.0.40
codegen_flags: <defaults>
</compile_context>

<pallas_src>
import functools
import math

import jax
import jax.numpy as jnp
from jax import lax
from jax.experimental import pallas as pl
from jax.experimental.pallas import tpu as pltpu


# ----------------------------- kernel ---------------------------------------


def _attention_kernel(q_ref, k_ref, v_ref, wq_ref, wk_ref, wv_ref, o_ref, *,
                      inv_scale):
    # q/k/v_ref: (Bt, T, Dp) f32 blocks; w*_ref: (Dp, Dp) bf16, pre-transposed
    # to (D_in, D_out) in the wrapper (no in-kernel transpose).
    Bt, T, Dp = q_ref.shape

    # Collapse (Bt, T) -> rows (leading-dim merge, last dim unchanged => free)
    # and cast to bf16: MXU runs at native bf16 rate, accumulation in f32.
    q2 = q_ref[...].reshape(Bt * T, Dp).astype(jnp.bfloat16)
    k2 = k_ref[...].reshape(Bt * T, Dp).astype(jnp.bfloat16)
    v2 = v_ref[...].reshape(Bt * T, Dp).astype(jnp.bfloat16)

    Qp = jnp.dot(q2, wq_ref[...], preferred_element_type=jnp.float32)
    Kp = jnp.dot(k2, wk_ref[...], preferred_element_type=jnp.float32)
    Vp = jnp.dot(v2, wv_ref[...], preferred_element_type=jnp.float32)

    # Fold the 1/sqrt(embedding_dim) scale onto Qp: one O(rows*Dp) multiply
    # instead of an O(Bt*T*T) pass over the score tile.
    Qp = Qp * jnp.float32(inv_scale)

    Qb = Qp.astype(jnp.bfloat16).reshape(Bt, T, Dp)
    Kb = Kp.astype(jnp.bfloat16).reshape(Bt, T, Dp)
    Vb = Vp.astype(jnp.bfloat16).reshape(Bt, T, Dp)

    # Scores: contract the last dims directly (no K transpose). bf16 operands,
    # f32 accumulation.
    s = jnp.einsum("bqd,bkd->bqk", Qb, Kb,
                   preferred_element_type=jnp.float32)          # (Bt, T, T)

    # torch.tril + x[x == 0] = -inf, fused into a single select. The causal
    # mask is built from a 2-D (T, T) iota and broadcast over the batch dim.
    # Any exact zero in the lower triangle also becomes -inf (matches PyTorch;
    # same latent NaN hazard if an entire row is -inf).
    row = lax.broadcasted_iota(jnp.int32, (T, T), 0)
    col = lax.broadcasted_iota(jnp.int32, (T, T), 1)
    drop = (col > row)[None, :, :] | (s == 0.0)
    s = jnp.where(drop, -jnp.inf, s)

    # Softmax in f32 (exp(-inf - m) == 0); approx reciprocal goes to the
    # otherwise-idle EUP slot.
    m = jnp.max(s, axis=-1, keepdims=True)
    e = jnp.exp(s - m)
    denom = jnp.sum(e, axis=-1, keepdims=True)
    p = e * pl.reciprocal(denom, approx=True)

    out = jnp.einsum("bqk,bkd->bqd", p.astype(jnp.bfloat16), Vb,
                     preferred_element_type=jnp.float32)        # (Bt, T, Dp)
    # Lane-dense store: Dp is a multiple of 128, so this is an unmasked vst.
    o_ref[...] = out.astype(o_ref.dtype)


# --------------------------- wrapper helpers --------------------------------


def _tpu_generation():
    """(vmem_capacity_bytes, is_v7x). Guarded — falls back to safe defaults."""
    kind = ""
    try:
        kind = (jax.devices()[0].device_kind or "").lower()
    except Exception:
        pass
    is_v7 = ("v7" in kind) or ("7x" in kind)
    try:
        info = pltpu.get_tpu_info()
        vmem_cap = int(getattr(info, "vmem_capacity_bytes"))
    except Exception:
        vmem_cap = (64 if is_v7 else 128) * 1024 * 1024
    return vmem_cap, is_v7


def _block_footprint_bytes(bb, T, Dp):
    """Rough per-grid-step VMEM footprint for block_b == bb."""
    act = bb * T * Dp
    f32, bf16 = 4, 2
    dma = 2 * (3 + 1) * act * f32            # double-buffered in/out blocks
    proj = 3 * act * (f32 + bf16)            # Qp/Kp/Vp f32 + bf16 copies
    cast_in = 3 * act * bf16                 # bf16 copies of the inputs
    scores = 3 * bb * T * T * f32            # s / exp / p intermediates
    weights = 2 * 3 * Dp * Dp * bf16         # double-buffered weight blocks
    return dma + proj + cast_in + scores + weights


def _choose_block_b(B, T, Dp, vmem_cap, is_v7):
    budget = vmem_cap // 2                   # leave headroom for the compiler
    cands = [c for c in range(B, 0, -1) if B % c == 0]      # divisors, desc.
    fitting = [c for c in cands if _block_footprint_bytes(c, T, Dp) <= budget]
    if not fitting:
        fitting = [1]
    if is_v7:
        # 2 TensorCores: prefer an even number of parallel grid steps (>= 2)
        # so megacore sharding is balanced.
        even = [c for c in fitting if (B // c) >= 2 and (B // c) % 2 == 0]
        if even:
            return even[0]
    # Single-TC parts (v5e/v6e): largest block that fits (grid of 1 is fine).
    return fitting[0]


# ------------------------------ wrapper --------------------------------------


def attention_layer(Q, K, V, wq, wk, wv, *, block_b=None):
    """Q, K, V: (B, T, D) float32; wq/wk/wv: (D, D) PyTorch-layout (out, in)."""
    B, T, D = Q.shape
    vmem_cap, is_v7 = _tpu_generation()

    # Lane-dense shaping: pad the embedding dim up to a multiple of 128 with
    # zeros (weights get zero rows/cols), so all VMEM tiles are lane-full and
    # the padded output channels are exactly zero (sliced off below).
    Dp = max(128, ((D + 127) // 128) * 128)
    pad = Dp - D

    # Pre-transpose the PyTorch (out, in) weights ONCE, pad, and cast to bf16.
    def _prep_w(w):
        wt = jnp.asarray(w).T
        if pad:
            wt = jnp.pad(wt, ((0, pad), (0, pad)))
        return wt.astype(jnp.bfloat16)

    wq_t, wk_t, wv_t = _prep_w(wq), _prep_w(wk), _prep_w(wv)

    def _prep_x(x):
        return jnp.pad(x, ((0, 0), (0, 0), (0, pad))) if pad else x

    Qx, Kx, Vx = _prep_x(Q), _prep_x(K), _prep_x(V)

    if block_b is None:
        block_b = _choose_block_b(B, T, Dp, vmem_cap, is_v7)
    assert B % block_b == 0, "batch must be divisible by block_b"

    footprint = _block_footprint_bytes(block_b, T, Dp)
    max_limit = (48 if is_v7 else 100) * 1024 * 1024
    vmem_limit = int(min(max_limit, max(32 * 1024 * 1024, 2 * footprint)))

    act_spec = pl.BlockSpec((block_b, T, Dp), lambda b: (b, 0, 0))
    w_spec = pl.BlockSpec((Dp, Dp), lambda b: (0, 0))   # constant across grid

    kernel = functools.partial(_attention_kernel,
                               inv_scale=1.0 / math.sqrt(D))

    out = pl.pallas_call(
        kernel,
        out_shape=jax.ShapeDtypeStruct((B, T, Dp), Q.dtype),
        grid_spec=pltpu.PrefetchScalarGridSpec(
            num_scalar_prefetch=0,
            grid=(B // block_b,),
            in_specs=[act_spec, act_spec, act_spec, w_spec, w_spec, w_spec],
            out_specs=act_spec,
        ),
        compiler_params=pltpu.CompilerParams(
            dimension_semantics=("parallel",),
            vmem_limit_bytes=vmem_limit,
        ),
    )(Qx, Kx, Vx, wq_t, wk_t, wv_t)

    return out[..., :D] if pad else out


# ------------------------------ reference ------------------------------------


def _reference(Q, K, V, wq, wk, wv):
    """Pure-JAX f32 reference mirroring the PyTorch forward exactly."""
    D = Q.shape[-1]
    Qp = Q @ wq.T
    Kp = K @ wk.T
    Vp = V @ wv.T
    s = jnp.einsum("btd,bsd->bts", Qp, Kp)
    T = s.shape[-1]
    tril = jnp.tril(jnp.ones((T, T), dtype=bool))
    s = jnp.where(tril, s, 0.0)
    s = jnp.where(s == 0.0, -jnp.inf, s)
    s = s / math.sqrt(D)
    p = jax.nn.softmax(s, axis=-1)
    return jnp.einsum("bts,bsd->btd", p, Vp)


if __name__ == "__main__":
    B, T, D = 2, 8, 32  # batch, seq, embedding_dim

    key = jax.random.PRNGKey(0)
    kq, kk, kv, kwq, kwk, kwv = jax.random.split(key, 6)

    Q = jax.random.normal(kq, (B, T, D), dtype=jnp.float32)
    K = jax.random.normal(kk, (B, T, D), dtype=jnp.float32)
    V = jax.random.normal(kv, (B, T, D), dtype=jnp.float32)

    # Deterministic parameter init, nn.Linear-style uniform(-1/sqrt(D), 1/sqrt(D)).
    bound = 1.0 / math.sqrt(D)
    wq = jax.random.uniform(kwq, (D, D), jnp.float32, -bound, bound)
    wk = jax.random.uniform(kwk, (D, D), jnp.float32, -bound, bound)
    wv = jax.random.uniform(kwv, (D, D), jnp.float32, -bound, bound)

    out = attention_layer(Q, K, V, wq, wk, wv)
    out = jax.block_until_ready(out)

    ref = _reference(Q, K, V, wq, wk, wv)
    assert out.shape == (B, T, D)
    # Tolerance relaxed vs. the f32 reference: matmuls use bf16 MXU operands
    # (f32 accumulation) and the softmax uses the approx (EUP) reciprocal.
    assert jnp.allclose(out, ref, atol=3e-2, rtol=3e-2), "mismatch vs reference"

    print("KERNEL_OK")
</pallas_src>

<mosaic_0001>
module attributes {stable_mosaic.version = 11 : i64} {
  func.func @_attention_kernel(%arg0: i32, %arg1: memref<2x8x128xf32, #tpu.memory_space<vmem>>, %arg2: memref<2x8x128xf32, #tpu.memory_space<vmem>>, %arg3: memref<2x8x128xf32, #tpu.memory_space<vmem>>, %arg4: memref<128x128xbf16, #tpu.memory_space<vmem>>, %arg5: memref<128x128xbf16, #tpu.memory_space<vmem>>, %arg6: memref<128x128xbf16, #tpu.memory_space<vmem>>, %arg7: memref<2x8x128xf32, #tpu.memory_space<vmem>>) attributes {dimension_semantics = [#tpu.dimension_semantics<parallel>], iteration_bounds = array<i64: 1>, scalar_prefetch = 0 : i64, scratch_operands = 0 : i64, tpu.core_type = #tpu.core_type<tc>, window_params = [{transform_indices = @transform_0, window_bounds = array<i64: 2, 8, 128>}, {transform_indices = @transform_1, window_bounds = array<i64: 2, 8, 128>}, {transform_indices = @transform_2, window_bounds = array<i64: 2, 8, 128>}, {pipeline_mode = #tpu.pipeline_mode<synchronous>, transform_indices = @transform_3, window_bounds = array<i64: 128, 128>}, {pipeline_mode = #tpu.pipeline_mode<synchronous>, transform_indices = @transform_4, window_bounds = array<i64: 128, 128>}, {pipeline_mode = #tpu.pipeline_mode<synchronous>, transform_indices = @transform_5, window_bounds = array<i64: 128, 128>}, {transform_indices = @transform_6, window_bounds = array<i64: 2, 8, 128>}]} {
    %c0 = arith.constant 0 : index
    %c0_0 = arith.constant 0 : index
    %c0_1 = arith.constant 0 : index
    %0 = vector.load %arg1[%c0, %c0_0, %c0_1] : memref<2x8x128xf32, #tpu.memory_space<vmem>>, vector<2x8x128xf32>
    %1 = vector.shape_cast %0 : vector<2x8x128xf32> to vector<16x128xf32>
    %2 = arith.truncf %1 : vector<16x128xf32> to vector<16x128xbf16>
    %c0_2 = arith.constant 0 : index
    %c0_3 = arith.constant 0 : index
    %c0_4 = arith.constant 0 : index
    %3 = vector.load %arg2[%c0_2, %c0_3, %c0_4] : memref<2x8x128xf32, #tpu.memory_space<vmem>>, vector<2x8x128xf32>
    %4 = vector.shape_cast %3 : vector<2x8x128xf32> to vector<16x128xf32>
    %5 = arith.truncf %4 : vector<16x128xf32> to vector<16x128xbf16>
    %c0_5 = arith.constant 0 : index
    %c0_6 = arith.constant 0 : index
    %c0_7 = arith.constant 0 : index
    %6 = vector.load %arg3[%c0_5, %c0_6, %c0_7] : memref<2x8x128xf32, #tpu.memory_space<vmem>>, vector<2x8x128xf32>
    %7 = vector.shape_cast %6 : vector<2x8x128xf32> to vector<16x128xf32>
    %8 = arith.truncf %7 : vector<16x128xf32> to vector<16x128xbf16>
    %c0_8 = arith.constant 0 : index
    %c0_9 = arith.constant 0 : index
    %9 = vector.load %arg4[%c0_8, %c0_9] : memref<128x128xbf16, #tpu.memory_space<vmem>>, vector<128x128xbf16>
    %cst = arith.constant dense<0.000000e+00> : vector<16x128xf32>
    %10 = tpu.matmul %2, %9, %cst {dimension_numbers = #tpu.dot_dimension_numbers<[1], [0], [0], [1], [0, 0, 1, 1], [], []>} : vector<16x128xbf16>, vector<128x128xbf16>, vector<16x128xf32> -> vector<16x128xf32>
    %c0_10 = arith.constant 0 : index
    %c0_11 = arith.constant 0 : index
    %11 = vector.load %arg5[%c0_10, %c0_11] : memref<128x128xbf16, #tpu.memory_space<vmem>>, vector<128x128xbf16>
    %cst_12 = arith.constant dense<0.000000e+00> : vector<16x128xf32>
    %12 = tpu.matmul %5, %11, %cst_12 {dimension_numbers = #tpu.dot_dimension_numbers<[1], [0], [0], [1], [0, 0, 1, 1], [], []>} : vector<16x128xbf16>, vector<128x128xbf16>, vector<16x128xf32> -> vector<16x128xf32>
    %c0_13 = arith.constant 0 : index
    %c0_14 = arith.constant 0 : index
    %13 = vector.load %arg6[%c0_13, %c0_14] : memref<128x128xbf16, #tpu.memory_space<vmem>>, vector<128x128xbf16>
    %cst_15 = arith.constant dense<0.000000e+00> : vector<16x128xf32>
    %14 = tpu.matmul %8, %13, %cst_15 {dimension_numbers = #tpu.dot_dimension_numbers<[1], [0], [0], [1], [0, 0, 1, 1], [], []>} : vector<16x128xbf16>, vector<128x128xbf16>, vector<16x128xf32> -> vector<16x128xf32>
    %cst_16 = arith.constant 0.176776692 : f32
    %15 = vector.broadcast %cst_16 : f32 to vector<16x128xf32>
    %16 = arith.mulf %10, %15 : vector<16x128xf32>
    %17 = arith.truncf %16 : vector<16x128xf32> to vector<16x128xbf16>
    %18 = vector.shape_cast %17 : vector<16x128xbf16> to vector<2x8x128xbf16>
    %19 = arith.truncf %12 : vector<16x128xf32> to vector<16x128xbf16>
    %20 = vector.shape_cast %19 : vector<16x128xbf16> to vector<2x8x128xbf16>
    %21 = arith.truncf %14 : vector<16x128xf32> to vector<16x128xbf16>
    %22 = vector.shape_cast %21 : vector<16x128xbf16> to vector<2x8x128xbf16>
    "tpu.trace_start"() <{level = 10 : i32, message = "bqd,bkd->bqk"}> : () -> ()
    %cst_17 = arith.constant dense<0.000000e+00> : vector<2x8x8xf32>
    %23 = tpu.matmul %18, %20, %cst_17 {dimension_numbers = #tpu.dot_dimension_numbers<[2], [2], [1], [1], [0, 0, 0, 1, 1, 1], [0], [0]>} : vector<2x8x128xbf16>, vector<2x8x128xbf16>, vector<2x8x8xf32> -> vector<2x8x8xf32>
    "tpu.trace_stop"() : () -> ()
    %24 = tpu.iota {dimensions = array<i32: 0>} : vector<8x8xi32>
    %25 = tpu.iota {dimensions = array<i32: 1>} : vector<8x8xi32>
    %26 = arith.cmpi sgt, %25, %24 : vector<8x8xi32>
    %27 = vector.shape_cast %26 : vector<8x8xi1> to vector<1x8x8xi1>
    %cst_18 = arith.constant 0.000000e+00 : f32
    %28 = vector.broadcast %cst_18 : f32 to vector<2x8x8xf32>
    %29 = arith.cmpf oeq, %23, %28 : vector<2x8x8xf32>
    %30 = vector.broadcast %27 : vector<1x8x8xi1> to vector<2x8x8xi1>
    %31 = arith.ori %30, %29 : vector<2x8x8xi1>
    %cst_19 = arith.constant 0xFF800000 : f32
    %32 = vector.broadcast %cst_19 : f32 to vector<2x8x8xf32>
    %33 = arith.select %31, %32, %23 : vector<2x8x8xi1>, vector<2x8x8xf32>
    %cst_20 = arith.constant dense<0xFF800000> : vector<2x8xf32>
    %34 = vector.multi_reduction <maximumf>, %33, %cst_20 [2] : vector<2x8x8xf32> to vector<2x8xf32>
    %35 = vector.shape_cast %34 : vector<2x8xf32> to vector<2x8x1xf32>
    %36 = vector.broadcast %35 : vector<2x8x1xf32> to vector<2x8x8xf32>
    %37 = arith.subf %33, %36 : vector<2x8x8xf32>
    %38 = math.exp %37 : vector<2x8x8xf32>
    %cst_21 = arith.constant dense<0.000000e+00> : vector<2x8xf32>
    %39 = vector.multi_reduction <add>, %38, %cst_21 [2] : vector<2x8x8xf32> to vector<2x8xf32>
    %40 = vector.shape_cast %39 : vector<2x8xf32> to vector<2x8x1xf32>
    %41 = tpu.reciprocal %40 {approx = true} : vector<2x8x1xf32> -> vector<2x8x1xf32>
    %42 = vector.broadcast %41 : vector<2x8x1xf32> to vector<2x8x8xf32>
    %43 = arith.mulf %38, %42 : vector<2x8x8xf32>
    %44 = arith.truncf %43 : vector<2x8x8xf32> to vector<2x8x8xbf16>
    "tpu.trace_start"() <{level = 10 : i32, message = "bqk,bkd->bqd"}> : () -> ()
    %cst_22 = arith.constant dense<0.000000e+00> : vector<2x8x128xf32>
    %45 = tpu.matmul %44, %22, %cst_22 {dimension_numbers = #tpu.dot_dimension_numbers<[2], [1], [1], [2], [0, 0, 0, 1, 1, 2], [0], [0]>} : vector<2x8x8xbf16>, vector<2x8x128xbf16>, vector<2x8x128xf32> -> vector<2x8x128xf32>
    "tpu.trace_stop"() : () -> ()
    %c0_23 = arith.constant 0 : index
    %c0_24 = arith.constant 0 : index
    %c0_25 = arith.constant 0 : index
    %46 = vector.load %arg7[%c0_23, %c0_24, %c0_25] : memref<2x8x128xf32, #tpu.memory_space<vmem>>, vector<2x8x128xf32>
    tpu.vector_store %arg7[%c0_23, %c0_24, %c0_25], %45 {strides = array<i32>} : memref<2x8x128xf32, #tpu.memory_space<vmem>>, vector<2x8x128xf32>,
    return
  }
  func.func @transform_0(%arg0: i32) -> (i32, i32, i32) {
    %c0_i32 = arith.constant 0 : i32
    %c0_i32_0 = arith.constant 0 : i32
    %c0_i32_1 = arith.constant 0 : i32
    return %arg0, %c0_i32, %c0_i32_0 : i32, i32, i32
  }
  func.func @transform_1(%arg0: i32) -> (i32, i32, i32) {
    %c0_i32 = arith.constant 0 : i32
    %c0_i32_0 = arith.constant 0 : i32
    %c0_i32_1 = arith.constant 0 : i32
    return %arg0, %c0_i32, %c0_i32_0 : i32, i32, i32
  }
  func.func @transform_2(%arg0: i32) -> (i32, i32, i32) {
    %c0_i32 = arith.constant 0 : i32
    %c0_i32_0 = arith.constant 0 : i32
    %c0_i32_1 = arith.constant 0 : i32
    return %arg0, %c0_i32, %c0_i32_0 : i32, i32, i32
  }
  func.func @transform_3(%arg0: i32) -> (i32, i32) {
    %c0_i32 = arith.constant 0 : i32
    %c0_i32_0 = arith.constant 0 : i32
    %c0_i32_1 = arith.constant 0 : i32
    return %c0_i32, %c0_i32_0 : i32, i32
  }
  func.func @transform_4(%arg0: i32) -> (i32, i32) {
    %c0_i32 = arith.constant 0 : i32
    %c0_i32_0 = arith.constant 0 : i32
    %c0_i32_1 = arith.constant 0 : i32
    return %c0_i32, %c0_i32_0 : i32, i32
  }
  func.func @transform_5(%arg0: i32) -> (i32, i32) {
    %c0_i32 = arith.constant 0 : i32
    %c0_i32_0 = arith.constant 0 : i32
    %c0_i32_1 = arith.constant 0 : i32
    return %c0_i32, %c0_i32_0 : i32, i32
  }
  func.func @transform_6(%arg0: i32) -> (i32, i32, i32) {
    %c0_i32 = arith.constant 0 : i32
    %c0_i32_0 = arith.constant 0 : i32
    %c0_i32_1 = arith.constant 0 : i32
    return %arg0, %c0_i32, %c0_i32_0 : i32, i32, i32
  }
}

</mosaic_0001>

<llo_original>
// kernel: tpu_custom_call.1
$region0: #{tpu_custom_call.1}
  #allocation0 [shape = 'u32[]', space=smem, size = 0x4, offset = 0x4, fixed_abs, tag = 'smem constant byte address 0x4 - core index']
  #allocation1 [shape = 'u32[144,128]{1,0:T(1,128)}', space=vmem, size = 0x12000, scoped, tag = 'internal scratch']
  %s0 = inlined_call_operand.hbm [shape: f32[2,8,128], index: 0, kind: input, shape index: {}]
  %s1 = inlined_call_operand.hbm [shape: f32[2,8,128], index: 1, kind: input, shape index: {}]
  %s2 = inlined_call_operand.hbm [shape: f32[2,8,128], index: 2, kind: input, shape index: {}]
  %s3 = inlined_call_operand.hbm [shape: bf16[128,128], index: 3, kind: input, shape index: {}]
  %s4 = inlined_call_operand.hbm [shape: bf16[128,128], index: 4, kind: input, shape index: {}]
  %s5 = inlined_call_operand.hbm [shape: bf16[128,128], index: 5, kind: input, shape index: {}]
  %s6 = inlined_call_operand.hbm [shape: f32[2,8,128], index: 6, kind: output, shape index: {}]
  %s7 = sld [smem:[#allocation0]]
  $region58: #{tpu_custom_call.1} parent=0
    _
  %s9 = ssub.s32 1, %s7
  %s10 = scalar_select 0, %s9, %s7
  $region1: #{tpu_custom_call.1} parent=0
    #allocation2 [shape = 'u8[8192]{0}', space=vmem, size = 0x2000, scoped, tag = 'input window, operand 0, single buffered']
    #allocation3 [shape = 's32[1]{0}', space=sflag, size = 0x4, scoped, tag = 'scoped memory for tpu_custom_call.1']
    #allocation4 [shape = 's32[1]{0}', space=sflag, size = 0x4, scoped, tag = 'scoped memory for tpu_custom_call.1']
    #allocation5 [shape = 'u8[8192]{0}', space=vmem, size = 0x2000, scoped, tag = 'input window, operand 1, single buffered']
    #allocation6 [shape = 's32[1]{0}', space=sflag, size = 0x4, scoped, tag = 'scoped memory for tpu_custom_call.1']
    #allocation7 [shape = 'u8[8192]{0}', space=vmem, size = 0x2000, scoped, tag = 'input window, operand 2, single buffered']
    #allocation8 [shape = 'u8[32768]{0}', space=vmem, size = 0x8000, scoped, tag = 'input window, operand 3, single buffered']
    #allocation9 [shape = 's32[1]{0}', space=sflag, size = 0x4, scoped, tag = 'scoped memory for tpu_custom_call.1']
    #allocation10 [shape = 'u8[32768]{0}', space=vmem, size = 0x8000, scoped, tag = 'input window, operand 4, single buffered']
    #allocation11 [shape = 'u8[32768]{0}', space=vmem, size = 0x8000, scoped, tag = 'input window, operand 5, single buffered']
    #allocation12 [shape = 's32[1]{0}', space=sflag, size = 0x4, scoped, tag = 'scoped memory for tpu_custom_call.1']
    #allocation13 [shape = 'u8[8192]{0}', space=vmem, size = 0x2000, scoped, tag = 'output window, operand 0, single buffered']
    %11 = vsyncpa [#allocation3], 0
    %12 = vsyncpa [#allocation6], 0
    %13 = vsyncpa [#allocation9], 0
    %14 = vsyncpa [#allocation12], 0
    %15 = vsyncpa [#allocation4], 0
    // Predicated region
    $region2: #{tpu_custom_call.1} parent=1 // pred_check
      _
    $region3: #{tpu_custom_call.1} parent=1 // pred_check_branch
      %17 = sbr.rel (0) target = $region5
    $region4: #{tpu_custom_call.1} parent=1 // pred_region
      %s19 = ssub.s32 256, 256
      %20 = vsyncadd [#allocation3], %s19
      %s21 = sshll.u32 [#allocation2], 4
      %s22 = int_to_ptr.vmem [resolvable:$true] %s21
      %27 = dma.hbm_to_vmem [thread:$0]  %s0, 256, %s22, [#allocation3], 128, 128, 8
    $region5: #{tpu_custom_call.1} parent=1 // pred_fallthru
      _
    // Predicated region
    $region6: #{tpu_custom_call.1} parent=1 // pred_check
      _
    $region7: #{tpu_custom_call.1} parent=1 // pred_check_branch
      %29 = sbr.rel (0) target = $region9
    $region8: #{tpu_custom_call.1} parent=1 // pred_region
      %s31 = ssub.s32 256, 256
      %32 = vsyncadd [#allocation6], %s31
      %s33 = sshll.u32 [#allocation5], 4
      %s34 = int_to_ptr.vmem [resolvable:$true] %s33
      %39 = dma.hbm_to_vmem [thread:$0]  %s1, 256, %s34, [#allocation6], 128, 128, 8
    $region9: #{tpu_custom_call.1} parent=1 // pred_fallthru
      _
    // Predicated region
    $region10: #{tpu_custom_call.1} parent=1 // pred_check
      _
    $region11: #{tpu_custom_call.1} parent=1 // pred_check_branch
      %41 = sbr.rel (0) target = $region13
    $region12: #{tpu_custom_call.1} parent=1 // pred_region
      %s43 = ssub.s32 256, 256
      %44 = vsyncadd [#allocation6], %s43
      %s45 = sshll.u32 [#allocation7], 4
      %s46 = int_to_ptr.vmem [resolvable:$true] %s45
      %51 = dma.hbm_to_vmem [thread:$0]  %s2, 256, %s46, [#allocation6], 128, 128, 8
    $region13: #{tpu_custom_call.1} parent=1 // pred_fallthru
      _
    // Predicated region
    $region14: #{tpu_custom_call.1} parent=1 // pred_check
      _
    $region15: #{tpu_custom_call.1} parent=1 // pred_check_branch
      %53 = sbr.rel (0) target = $region17
    $region16: #{tpu_custom_call.1} parent=1 // pred_region
      %s55 = ssub.s32 1024, 1024
      %56 = vsyncadd [#allocation9], %s55
      %s57 = sshll.u32 [#allocation8], 4
      %s58 = int_to_ptr.vmem [resolvable:$true] %s57
      %63 = dma.hbm_to_vmem [thread:$0]  %s3, 1024, %s58, [#allocation9], 64, 64, 4
    $region17: #{tpu_custom_call.1} parent=1 // pred_fallthru
      _
    // Predicated region
    $region18: #{tpu_custom_call.1} parent=1 // pred_check
      _
    $region19: #{tpu_custom_call.1} parent=1 // pred_check_branch
      %65 = sbr.rel (0) target = $region21
    $region20: #{tpu_custom_call.1} parent=1 // pred_region
      %s67 = ssub.s32 1024, 1024
      %68 = vsyncadd [#allocation9], %s67
      %s69 = sshll.u32 [#allocation10], 4
      %s70 = int_to_ptr.vmem [resolvable:$true] %s69
      %75 = dma.hbm_to_vmem [thread:$0]  %s4, 1024, %s70, [#allocation9], 64, 64, 4
    $region21: #{tpu_custom_call.1} parent=1 // pred_fallthru
      _
    // Predicated region
    $region22: #{tpu_custom_call.1} parent=1 // pred_check
      _
    $region23: #{tpu_custom_call.1} parent=1 // pred_check_branch
      %77 = sbr.rel (0) target = $region25
    $region24: #{tpu_custom_call.1} parent=1 // pred_region
      %s79 = ssub.s32 1024, 1024
      %80 = vsyncadd [#allocation12], %s79
      %s81 = sshll.u32 [#allocation11], 4
      %s82 = int_to_ptr.vmem [resolvable:$true] %s81
      %87 = dma.hbm_to_vmem [thread:$0]  %s5, 1024, %s82, [#allocation12], 64, 64, 4
    $region25: #{tpu_custom_call.1} parent=1 // pred_fallthru
      _
    // Predicated region
    $region26: #{tpu_custom_call.1} parent=1 // pred_check
      _
    $region27: #{tpu_custom_call.1} parent=1 // pred_check_branch
      %89 = sbr.rel (0) target = $region29
    $region28: #{tpu_custom_call.1} parent=1 // pred_region
      %90 = dma.done [#allocation3], 256
    $region29: #{tpu_custom_call.1} parent=1 // pred_fallthru
      _
    // Predicated region
    $region30: #{tpu_custom_call.1} parent=1 // pred_check
      _
    $region31: #{tpu_custom_call.1} parent=1 // pred_check_branch
      %92 = sbr.rel (0) target = $region33
    $region32: #{tpu_custom_call.1} parent=1 // pred_region
      %93 = dma.done [#allocation6], 256
    $region33: #{tpu_custom_call.1} parent=1 // pred_fallthru
      _
    // Predicated region
    $region34: #{tpu_custom_call.1} parent=1 // pred_check
      _
    $region35: #{tpu_custom_call.1} parent=1 // pred_check_branch
      %95 = sbr.rel (0) target = $region37
    $region36: #{tpu_custom_call.1} parent=1 // pred_region
      %96 = dma.done [#allocation6], 256
    $region37: #{tpu_custom_call.1} parent=1 // pred_fallthru
      _
    // Predicated region
    $region38: #{tpu_custom_call.1} parent=1 // pred_check
      _
    $region39: #{tpu_custom_call.1} parent=1 // pred_check_branch
      %98 = sbr.rel (0) target = $region41
    $region40: #{tpu_custom_call.1} parent=1 // pred_region
      %99 = dma.done [#allocation9], 1024
    $region41: #{tpu_custom_call.1} parent=1 // pred_fallthru
      _
    // Predicated region
    $region42: #{tpu_custom_call.1} parent=1 // pred_check
      _
    $region43: #{tpu_custom_call.1} parent=1 // pred_check_branch
      %101 = sbr.rel (0) target = $region45
    $region44: #{tpu_custom_call.1} parent=1 // pred_region
      %102 = dma.done [#allocation9], 1024
    $region45: #{tpu_custom_call.1} parent=1 // pred_fallthru
      _
    // Predicated region
    $region46: #{tpu_custom_call.1} parent=1 // pred_check
      _
    $region47: #{tpu_custom_call.1} parent=1 // pred_check_branch
      %104 = sbr.rel (0) target = $region49
    $region48: #{tpu_custom_call.1} parent=1 // pred_region
      %105 = dma.done [#allocation12], 1024
    $region49: #{tpu_custom_call.1} parent=1 // pred_fallthru
      _
    %v107 = vld [vmem:[#allocation2] sm:$0xff]
    %v108 = vld [vmem:[#allocation2 + $0x8] sm:$0xff]
    %v109 = vpack.c.bf16 %v108, %v107
    %v110 = vld [vmem:[#allocation5] sm:$0xff]
    %v111 = vld [vmem:[#allocation5 + $0x8] sm:$0xff]
    %v112 = vpack.c.bf16 %v111, %v110
    %v113 = vld [vmem:[#allocation7] sm:$0xff]
    %v114 = vld [vmem:[#allocation7 + $0x8] sm:$0xff]
    %v115 = vpack.c.bf16 %v114, %v113
    %v116 = vld [vmem:[#allocation8] sm:$0xf]
    %v117 = vld [vmem:[#allocation8 + $0x4] sm:$0xf]
    %v118 = vld [vmem:[#allocation8 + $0x8] sm:$0xf]
    %v119 = vld [vmem:[#allocation8 + $0xc] sm:$0xf]
    %v120 = vld [vmem:[#allocation8 + $0x10] sm:$0xf]
    %v121 = vld [vmem:[#allocation8 + $0x14] sm:$0xf]
    %v122 = vld [vmem:[#allocation8 + $0x18] sm:$0xf]
    %v123 = vld [vmem:[#allocation8 + $0x1c] sm:$0xf]
    %v124 = vld [vmem:[#allocation8 + $0x20] sm:$0xf]
    %v125 = vld [vmem:[#allocation8 + $0x24] sm:$0xf]
    %v126 = vld [vmem:[#allocation8 + $0x28] sm:$0xf]
    %v127 = vld [vmem:[#allocation8 + $0x2c] sm:$0xf]
    %v128 = vld [vmem:[#allocation8 + $0x30] sm:$0xf]
    %v129 = vld [vmem:[#allocation8 + $0x34] sm:$0xf]
    %v130 = vld [vmem:[#allocation8 + $0x38] sm:$0xf]
    %v131 = vld [vmem:[#allocation8 + $0x3c] sm:$0xf]
    %v148 = vunpack.c.l.b16 %v116
    %v149 = vunpack.c.l.b16 %v117
    %v150 = vunpack.c.l.b16 %v118
    %v151 = vunpack.c.l.b16 %v119
    %v152 = vunpack.c.l.b16 %v120
    %v153 = vunpack.c.l.b16 %v121
    %v154 = vunpack.c.l.b16 %v122
    %v155 = vunpack.c.l.b16 %v123
    %v156 = vunpack.c.l.b16 %v124
    %v157 = vunpack.c.l.b16 %v125
    %v158 = vunpack.c.l.b16 %v126
    %v159 = vunpack.c.l.b16 %v127
    %v160 = vunpack.c.l.b16 %v128
    %v161 = vunpack.c.l.b16 %v129
    %v162 = vunpack.c.l.b16 %v130
    %v163 = vunpack.c.l.b16 %v131
    %v164 = vpack.c.b16 %v149, %v148
    %v165 = vpack.c.b16 %v151, %v150
    %v166 = vpack.c.b16 %v153, %v152
    %v167 = vpack.c.b16 %v155, %v154
    %v168 = vpack.c.b16 %v157, %v156
    %v169 = vpack.c.b16 %v159, %v158
    %v170 = vpack.c.b16 %v161, %v160
    %v171 = vpack.c.b16 %v163, %v162
    %180 = vmatprep.subr.bf16.mxu0 0
    %181 = vmatpush1.bf16.msra.mxu0 %v171
    %182 = vmatprep.subr.bf16.mxu0 0
    %183 = vmatpush1.bf16.msra.mxu0 %v170
    %184 = vmatprep.subr.bf16.mxu0 0
    %185 = vmatpush1.bf16.msra.mxu0 %v169
    %186 = vmatprep.subr.bf16.mxu0 0
    %187 = vmatpush1.bf16.msra.mxu0 %v168
    %188 = vmatprep.subr.bf16.mxu0 0
    %189 = vmatpush1.bf16.msra.mxu0 %v167
    %190 = vmatprep.subr.bf16.mxu0 0
    %191 = vmatpush1.bf16.msra.mxu0 %v166
    %192 = vmatprep.subr.bf16.mxu0 0
    %193 = vmatpush1.bf16.msra.mxu0 %v165
    %194 = vmatprep.subr.bf16.mxu0 0
    %195 = vmatpush1.bf16.msra.mxu0 %v164
    %196 = vmatprep.subr.bf16.mxu0 0
    %197 = vmatpush2.bf16.msra.mxu0 0
    %198 = vmatprep.subr.bf16.mxu0 0
    %199 = vmatpush2.bf16.msra.mxu0 0
    %200 = vmatprep.subr.bf16.mxu0 0
    %201 = vmatpush2.bf16.msra.mxu0 0
    %202 = vmatprep.subr.bf16.mxu0 0
    %203 = vmatpush2.bf16.msra.mxu0 0
    %204 = vmatprep.subr.bf16.mxu0 0
    %205 = vmatpush2.bf16.msra.mxu0 0
    %206 = vmatprep.subr.bf16.mxu0 0
    %207 = vmatpush2.bf16.msra.mxu0 0
    %208 = vmatprep.subr.bf16.mxu0 0
    %209 = vmatpush2.bf16.msra.mxu0 0
    %210 = vmatprep.subr.bf16.mxu0 0
    %211 = vmatpush2.bf16.msra.mxu0 0
    %212 = vmatprep.mubr.bf16.mxu0 0
    %213 = vmatmul.mubr.bf16.gmra.mxu0 %v109
    %v214 = vpop.f32.mrf.mxu0
    %v215 = vadd.f32 0.0, %v214
    %v216 = vpop.f32.mrf.mxu0
    %v217 = vpop.f32.mrf.mxu0
    %v218 = vadd.f32 0.0, %v217
    %v219 = vpop.f32.mrf.mxu0
    %220 = vdwg.mxu0
    %v221 = vld [vmem:[#allocation10] sm:$0xf]
    %v222 = vld [vmem:[#allocation10 + $0x4] sm:$0xf]
    %v223 = vld [vmem:[#allocation10 + $0x8] sm:$0xf]
    %v224 = vld [vmem:[#allocation10 + $0xc] sm:$0xf]
    %v225 = vld [vmem:[#allocation10 + $0x10] sm:$0xf]
    %v226 = vld [vmem:[#allocation10 + $0x14] sm:$0xf]
    %v227 = vld [vmem:[#allocation10 + $0x18] sm:$0xf]
    %v228 = vld [vmem:[#allocation10 + $0x1c] sm:$0xf]
    %v229 = vld [vmem:[#allocation10 + $0x20] sm:$0xf]
    %v230 = vld [vmem:[#allocation10 + $0x24] sm:$0xf]
    %v231 = vld [vmem:[#allocation10 + $0x28] sm:$0xf]
    %v232 = vld [vmem:[#allocation10 + $0x2c] sm:$0xf]
    %v233 = vld [vmem:[#allocation10 + $0x30] sm:$0xf]
    %v234 = vld [vmem:[#allocation10 + $0x34] sm:$0xf]
    %v235 = vld [vmem:[#allocation10 + $0x38] sm:$0xf]
    %v236 = vld [vmem:[#allocation10 + $0x3c] sm:$0xf]
    %v253 = vunpack.c.l.b16 %v221
    %v254 = vunpack.c.l.b16 %v222
    %v255 = vunpack.c.l.b16 %v223
    %v256 = vunpack.c.l.b16 %v224
    %v257 = vunpack.c.l.b16 %v225
    %v258 = vunpack.c.l.b16 %v226
    %v259 = vunpack.c.l.b16 %v227
    %v260 = vunpack.c.l.b16 %v228
    %v261 = vunpack.c.l.b16 %v229
    %v262 = vunpack.c.l.b16 %v230
    %v263 = vunpack.c.l.b16 %v231
    %v264 = vunpack.c.l.b16 %v232
    %v265 = vunpack.c.l.b16 %v233
    %v266 = vunpack.c.l.b16 %v234
    %v267 = vunpack.c.l.b16 %v235
    %v268 = vunpack.c.l.b16 %v236
    %v269 = vpack.c.b16 %v254, %v253
    %v270 = vpack.c.b16 %v256, %v255
    %v271 = vpack.c.b16 %v258, %v257
    %v272 = vpack.c.b16 %v260, %v259
    %v273 = vpack.c.b16 %v262, %v261
    %v274 = vpack.c.b16 %v264, %v263
    %v275 = vpack.c.b16 %v266, %v265
    %v276 = vpack.c.b16 %v268, %v267
    %285 = vmatprep.subr.bf16.mxu0 0
    %286 = vmatpush1.bf16.msra.mxu0 %v276
    %287 = vmatprep.subr.bf16.mxu0 0
    %288 = vmatpush1.bf16.msra.mxu0 %v275
    %289 = vmatprep.subr.bf16.mxu0 0
    %290 = vmatpush1.bf16.msra.mxu0 %v274
    %291 = vmatprep.subr.bf16.mxu0 0
    %292 = vmatpush1.bf16.msra.mxu0 %v273
    %293 = vmatprep.subr.bf16.mxu0 0
    %294 = vmatpush1.bf16.msra.mxu0 %v272
    %295 = vmatprep.subr.bf16.mxu0 0
    %296 = vmatpush1.bf16.msra.mxu0 %v271
    %297 = vmatprep.subr.bf16.mxu0 0
    %298 = vmatpush1.bf16.msra.mxu0 %v270
    %299 = vmatprep.subr.bf16.mxu0 0
    %300 = vmatpush1.bf16.msra.mxu0 %v269
    %301 = vmatprep.subr.bf16.mxu0 0
    %302 = vmatpush2.bf16.msra.mxu0 0
    %303 = vmatprep.subr.bf16.mxu0 0
    %304 = vmatpush2.bf16.msra.mxu0 0
    %305 = vmatprep.subr.bf16.mxu0 0
    %306 = vmatpush2.bf16.msra.mxu0 0
    %307 = vmatprep.subr.bf16.mxu0 0
    %308 = vmatpush2.bf16.msra.mxu0 0
    %309 = vmatprep.subr.bf16.mxu0 0
    %310 = vmatpush2.bf16.msra.mxu0 0
    %311 = vmatprep.subr.bf16.mxu0 0
    %312 = vmatpush2.bf16.msra.mxu0 0
    %313 = vmatprep.subr.bf16.mxu0 0
    %314 = vmatpush2.bf16.msra.mxu0 0
    %315 = vmatprep.subr.bf16.mxu0 0
    %316 = vmatpush2.bf16.msra.mxu0 0
    %317 = vmatprep.mubr.bf16.mxu0 0
    %318 = vmatmul.mubr.bf16.gmra.mxu0 %v112
    %v319 = vpop.f32.mrf.mxu0
    %v320 = vadd.f32 0.0, %v319
    %v321 = vpop.f32.mrf.mxu0
    %v322 = vpop.f32.mrf.mxu0
    %v323 = vadd.f32 0.0, %v322
    %v324 = vpop.f32.mrf.mxu0
    %325 = vdwg.mxu0
    %v326 = vld [vmem:[#allocation11] sm:$0xf]
    %v327 = vld [vmem:[#allocation11 + $0x4] sm:$0xf]
    %v328 = vld [vmem:[#allocation11 + $0x8] sm:$0xf]
    %v329 = vld [vmem:[#allocation11 + $0xc] sm:$0xf]
    %v330 = vld [vmem:[#allocation11 + $0x10] sm:$0xf]
    %v331 = vld [vmem:[#allocation11 + $0x14] sm:$0xf]
    %v332 = vld [vmem:[#allocation11 + $0x18] sm:$0xf]
    %v333 = vld [vmem:[#allocation11 + $0x1c] sm:$0xf]
    %v334 = vld [vmem:[#allocation11 + $0x20] sm:$0xf]
    %v335 = vld [vmem:[#allocation11 + $0x24] sm:$0xf]
    %v336 = vld [vmem:[#allocation11 + $0x28] sm:$0xf]
    %v337 = vld [vmem:[#allocation11 + $0x2c] sm:$0xf]
    %v338 = vld [vmem:[#allocation11 + $0x30] sm:$0xf]
    %v339 = vld [vmem:[#allocation11 + $0x34] sm:$0xf]
    %v340 = vld [vmem:[#allocation11 + $0x38] sm:$0xf]
    %v341 = vld [vmem:[#allocation11 + $0x3c] sm:$0xf]
    %v358 = vunpack.c.l.b16 %v326
    %v359 = vunpack.c.l.b16 %v327
    %v360 = vunpack.c.l.b16 %v328
    %v361 = vunpack.c.l.b16 %v329
    %v362 = vunpack.c.l.b16 %v330
    %v363 = vunpack.c.l.b16 %v331
    %v364 = vunpack.c.l.b16 %v332
    %v365 = vunpack.c.l.b16 %v333
    %v366 = vunpack.c.l.b16 %v334
    %v367 = vunpack.c.l.b16 %v335
    %v368 = vunpack.c.l.b16 %v336
    %v369 = vunpack.c.l.b16 %v337
    %v370 = vunpack.c.l.b16 %v338
    %v371 = vunpack.c.l.b16 %v339
    %v372 = vunpack.c.l.b16 %v340
    %v373 = vunpack.c.l.b16 %v341
    %v374 = vpack.c.b16 %v359, %v358
    %v375 = vpack.c.b16 %v361, %v360
    %v376 = vpack.c.b16 %v363, %v362
    %v377 = vpack.c.b16 %v365, %v364
    %v378 = vpack.c.b16 %v367, %v366
    %v379 = vpack.c.b16 %v369, %v368
    %v380 = vpack.c.b16 %v371, %v370
    %v381 = vpack.c.b16 %v373, %v372
    %390 = vmatprep.subr.bf16.mxu0 0
    %391 = vmatpush1.bf16.msra.mxu0 %v381
    %392 = vmatprep.subr.bf16.mxu0 0
    %393 = vmatpush1.bf16.msra.mxu0 %v380
    %394 = vmatprep.subr.bf16.mxu0 0
    %395 = vmatpush1.bf16.msra.mxu0 %v379
    %396 = vmatprep.subr.bf16.mxu0 0
    %397 = vmatpush1.bf16.msra.mxu0 %v378
    %398 = vmatprep.subr.bf16.mxu0 0
    %399 = vmatpush1.bf16.msra.mxu0 %v377
    %400 = vmatprep.subr.bf16.mxu0 0
    %401 = vmatpush1.bf16.msra.mxu0 %v376
    %402 = vmatprep.subr.bf16.mxu0 0
    %403 = vmatpush1.bf16.msra.mxu0 %v375
    %404 = vmatprep.subr.bf16.mxu0 0
    %405 = vmatpush1.bf16.msra.mxu0 %v374
    %406 = vmatprep.subr.bf16.mxu0 0
    %407 = vmatpush2.bf16.msra.mxu0 0
    %408 = vmatprep.subr.bf16.mxu0 0
    %409 = vmatpush2.bf16.msra.mxu0 0
    %410 = vmatprep.subr.bf16.mxu0 0
    %411 = vmatpush2.bf16.msra.mxu0 0
    %412 = vmatprep.subr.bf16.mxu0 0
    %413 = vmatpush2.bf16.msra.mxu0 0
    %414 = vmatprep.subr.bf16.mxu0 0
    %415 = vmatpush2.bf16.msra.mxu0 0
    %416 = vmatprep.subr.bf16.mxu0 0
    %417 = vmatpush2.bf16.msra.mxu0 0
    %418 = vmatprep.subr.bf16.mxu0 0
    %419 = vmatpush2.bf16.msra.mxu0 0
    %420 = vmatprep.subr.bf16.mxu0 0
    %421 = vmatpush2.bf16.msra.mxu0 0
    %422 = vmatprep.mubr.bf16.mxu0 0
    %423 = vmatmul.mubr.bf16.gmra.mxu0 %v115
    %v424 = vpop.f32.mrf.mxu0
    %v425 = vadd.f32 0.0, %v424
    %v426 = vpop.f32.mrf.mxu0
    %v427 = vpop.f32.mrf.mxu0
    %v428 = vadd.f32 0.0, %v427
    %v429 = vpop.f32.mrf.mxu0
    %430 = vdwg.mxu0
    %v431 = vmul.f32 %v215, 0.17677669
    %v432 = vmul.f32 %v218, 0.17677669
    %v433 = vpack.c.bf16 %v432, %v431
    %v435 = vunpack.c.l.b16 %v433
    %v436 = vunpack.c.h.b16 %v433
    %v437 = vpack.c.b16 %v435, %v435
    %v438 = vpack.c.b16 %v436, %v436
    %v441 = vpack.c.bf16 %v323, %v320
    %v443 = vunpack.c.l.b16 %v441
    %v444 = vunpack.c.h.b16 %v441
    %v445 = vpack.c.b16 %v443, %v443
    %v446 = vpack.c.b16 %v444, %v444
    %v449 = vpack.c.bf16 %v428, %v425
    %v451 = vunpack.c.l.b16 %v449
    %v452 = vunpack.c.h.b16 %v449
    %v453 = vpack.c.b16 %v451, %v451
    %v454 = vpack.c.b16 %v452, %v452
    %455 = vmatprep.subr.bf16.mxu0 0
    %456 = vmatpush1.bf16.xpose.msra.mxu0 0
    %457 = vmatprep.subr.bf16.mxu0 0
    %458 = vmatpush1.bf16.xpose.msra.mxu0 0
    %459 = vmatprep.subr.bf16.mxu0 0
    %460 = vmatpush1.bf16.xpose.msra.mxu0 0
    %461 = vmatprep.subr.bf16.mxu0 0
    %462 = vmatpush1.bf16.xpose.msra.mxu0 0
    %463 = vmatprep.subr.bf16.mxu0 0
    %464 = vmatpush1.bf16.xpose.msra.mxu0 0
    %465 = vmatprep.subr.bf16.mxu0 0
    %466 = vmatpush1.bf16.xpose.msra.mxu0 0
    %467 = vmatprep.subr.bf16.mxu0 0
    %468 = vmatpush1.bf16.xpose.msra.mxu0 0
    %469 = vmatprep.subr.bf16.mxu0 0
    %470 = vmatpush1.bf16.xpose.msra.mxu0 %v445
    %471 = vmatprep.subr.bf16.mxu0 0
    %472 = vmatpush2.bf16.xpose.msra.mxu0 0
    %473 = vmatprep.subr.bf16.mxu0 0
    %474 = vmatpush2.bf16.xpose.msra.mxu0 0
    %475 = vmatprep.subr.bf16.mxu0 0
    %476 = vmatpush2.bf16.xpose.msra.mxu0 0
    %477 = vmatprep.subr.bf16.mxu0 0
    %478 = vmatpush2.bf16.xpose.msra.mxu0 0
    %479 = vmatprep.subr.bf16.mxu0 0
    %480 = vmatpush2.bf16.xpose.msra.mxu0 0
    %481 = vmatprep.subr.bf16.mxu0 0
    %482 = vmatpush2.bf16.xpose.msra.mxu0 0
    %483 = vmatprep.subr.bf16.mxu0 0
    %484 = vmatpush2.bf16.xpose.msra.mxu0 0
    %485 = vmatprep.subr.bf16.mxu0 0
    %486 = vmatpush2.bf16.xpose.msra.mxu0 0
    %487 = vmatprep.mubr.bf16.mxu0 0
    %488 = vmatmul.mubr.bf16.gmra.mxu0 %v437
    %v489 = vpop.f32.mrf.mxu0
    %v490 = vadd.f32 0.0, %v489
    %v491 = vpop.f32.mrf.mxu0
    %v492 = vpop.f32.mrf.mxu0
    %v493 = vpop.f32.mrf.mxu0
    %494 = vdwg.mxu0
    %495 = vmatprep.subr.bf16.mxu0 0
    %496 = vmatpush1.bf16.xpose.msra.mxu0 0
    %497 = vmatprep.subr.bf16.mxu0 0
    %498 = vmatpush1.bf16.xpose.msra.mxu0 0
    %499 = vmatprep.subr.bf16.mxu0 0
    %500 = vmatpush1.bf16.xpose.msra.mxu0 0
    %501 = vmatprep.subr.bf16.mxu0 0
    %502 = vmatpush1.bf16.xpose.msra.mxu0 0
    %503 = vmatprep.subr.bf16.mxu0 0
    %504 = vmatpush1.bf16.xpose.msra.mxu0 0
    %505 = vmatprep.subr.bf16.mxu0 0
    %506 = vmatpush1.bf16.xpose.msra.mxu0 0
    %507 = vmatprep.subr.bf16.mxu0 0
    %508 = vmatpush1.bf16.xpose.msra.mxu0 0
    %509 = vmatprep.subr.bf16.mxu0 0
    %510 = vmatpush1.bf16.xpose.msra.mxu0 %v446
    %511 = vmatprep.subr.bf16.mxu0 0
    %512 = vmatpush2.bf16.xpose.msra.mxu0 0
    %513 = vmatprep.subr.bf16.mxu0 0
    %514 = vmatpush2.bf16.xpose.msra.mxu0 0
    %515 = vmatprep.subr.bf16.mxu0 0
    %516 = vmatpush2.bf16.xpose.msra.mxu0 0
    %517 = vmatprep.subr.bf16.mxu0 0
    %518 = vmatpush2.bf16.xpose.msra.mxu0 0
    %519 = vmatprep.subr.bf16.mxu0 0
    %520 = vmatpush2.bf16.xpose.msra.mxu0 0
    %521 = vmatprep.subr.bf16.mxu0 0
    %522 = vmatpush2.bf16.xpose.msra.mxu0 0
    %523 = vmatprep.subr.bf16.mxu0 0
    %524 = vmatpush2.bf16.xpose.msra.mxu0 0
    %525 = vmatprep.subr.bf16.mxu0 0
    %526 = vmatpush2.bf16.xpose.msra.mxu0 0
    %527 = vmatprep.mubr.bf16.mxu0 0
    %528 = vmatmul.mubr.bf16.gmra.mxu0 %v438
    %v529 = vpop.f32.mrf.mxu0
    %v530 = vadd.f32 0.0, %v529
    %v531 = vpop.f32.mrf.mxu0
    %v532 = vpop.f32.mrf.mxu0
    %v533 = vpop.f32.mrf.mxu0
    %534 = vdwg.mxu0
    %v535 = vlaneseq
    %v536 = vshrl.u32 %v535, 7
    %v537 = vlaneseq
    %v538 = vand.u32 %v537, 127
    %vm539 = vcmp.gt.s32.totalorder %v538, %v536
    %vm540 = vcmp.eq.f32.partialorder %v490, 0.0
    %vm541 = vcmp.eq.f32.partialorder %v530, 0.0
    %v542 = vsel %vm539, 1, 0
    %vm543 = vcmp.eq.s32.totalorder %v542, 1
    %vm544 = vmor %vm543, %vm540
    %vm545 = vmor %vm543, %vm541
    %v546 = vsel %vm544, -inf, %v490
    %v547 = vsel %vm545, -inf, %v530
    %vm548 = vcmask 64512
    %v549 = vsel %vm548, %v546, -inf
    %550 = vmax.xlane.f32.xlu0 %v549
    %v551 = vpop.xlane.xlu0 %550
    %v552 = vsel %vm548, %v547, -inf
    %553 = vmax.xlane.f32.xlu0 %v552
    %v554 = vpop.xlane.xlu0 %553
    %v555 = vsub.f32 %v546, %v551
    %v556 = vsub.f32 %v547, %v554
    %v557 = vmul.f32 %v555, 1.442695
    %v558 = vpow.pop %v557
    %v559 = vmul.f32 %v556, 1.442695
    %v560 = vpow.pop %v559
    %v561 = vsel %vm548, %v558, 0.0
    %562 = vadd.xlane.f32.xlu0 %v561
    %v563 = vpop.xlane.xlu0 %562
    %v564 = vsel %vm548, %v560, 0.0
    %565 = vadd.xlane.f32.xlu0 %v564
    %v566 = vpop.xlane.xlu0 %565
    %v567 = vrcp.pop %v563
    %v568 = vrcp.pop %v566
    %v569 = vmul.f32 %v558, %v567
    %v570 = vmul.f32 %v560, %v568
    %v571 = vpack.c.bf16 %v569, %v569
    %v572 = vpack.c.bf16 %v570, %v570
    %v574 = vsel %vm548, %v571, 0
    %vm576 = vcmask 1043456
    %v578 = vsel %vm576, %v453, 0
    %580 = vmatprep.subr.bf16.mxu0 0
    %581 = vmatpush1.bf16.msra.mxu0 0
    %582 = vmatprep.subr.bf16.mxu0 0
    %583 = vmatpush1.bf16.msra.mxu0 0
    %584 = vmatprep.subr.bf16.mxu0 0
    %585 = vmatpush1.bf16.msra.mxu0 0
    %586 = vmatprep.subr.bf16.mxu0 0
    %587 = vmatpush1.bf16.msra.mxu0 0
    %588 = vmatprep.subr.bf16.mxu0 0
    %589 = vmatpush1.bf16.msra.mxu0 0
    %590 = vmatprep.subr.bf16.mxu0 0
    %591 = vmatpush1.bf16.msra.mxu0 0
    %592 = vmatprep.subr.bf16.mxu0 0
    %593 = vmatpush1.bf16.msra.mxu0 0
    %594 = vmatprep.subr.bf16.mxu0 0
    %595 = vmatpush1.bf16.msra.mxu0 %v578
    %596 = vmatprep.subr.bf16.mxu0 0
    %597 = vmatpush2.bf16.msra.mxu0 0
    %598 = vmatprep.subr.bf16.mxu0 0
    %599 = vmatpush2.bf16.msra.mxu0 0
    %600 = vmatprep.subr.bf16.mxu0 0
    %601 = vmatpush2.bf16.msra.mxu0 0
    %602 = vmatprep.subr.bf16.mxu0 0
    %603 = vmatpush2.bf16.msra.mxu0 0
    %604 = vmatprep.subr.bf16.mxu0 0
    %605 = vmatpush2.bf16.msra.mxu0 0
    %606 = vmatprep.subr.bf16.mxu0 0
    %607 = vmatpush2.bf16.msra.mxu0 0
    %608 = vmatprep.subr.bf16.mxu0 0
    %609 = vmatpush2.bf16.msra.mxu0 0
    %610 = vmatprep.subr.bf16.mxu0 0
    %611 = vmatpush2.bf16.msra.mxu0 0
    %612 = vmatprep.mubr.bf16.mxu0 0
    %613 = vmatmul.mubr.bf16.gmra.mxu0 %v574
    %v614 = vpop.f32.mrf.mxu0
    %v615 = vadd.f32 0.0, %v614
    %v616 = vpop.f32.mrf.mxu0
    %v617 = vpop.f32.mrf.mxu0
    %v618 = vpop.f32.mrf.mxu0
    %619 = vdwg.mxu0
    %v621 = vsel %vm548, %v572, 0
    %v624 = vsel %vm576, %v454, 0
    %626 = vmatprep.subr.bf16.mxu0 0
    %627 = vmatpush1.bf16.msra.mxu0 0
    %628 = vmatprep.subr.bf16.mxu0 0
    %629 = vmatpush1.bf16.msra.mxu0 0
    %630 = vmatprep.subr.bf16.mxu0 0
    %631 = vmatpush1.bf16.msra.mxu0 0
    %632 = vmatprep.subr.bf16.mxu0 0
    %633 = vmatpush1.bf16.msra.mxu0 0
    %634 = vmatprep.subr.bf16.mxu0 0
    %635 = vmatpush1.bf16.msra.mxu0 0
    %636 = vmatprep.subr.bf16.mxu0 0
    %637 = vmatpush1.bf16.msra.mxu0 0
    %638 = vmatprep.subr.bf16.mxu0 0
    %639 = vmatpush1.bf16.msra.mxu0 0
    %640 = vmatprep.subr.bf16.mxu0 0
    %641 = vmatpush1.bf16.msra.mxu0 %v624
    %642 = vmatprep.subr.bf16.mxu0 0
    %643 = vmatpush2.bf16.msra.mxu0 0
    %644 = vmatprep.subr.bf16.mxu0 0
    %645 = vmatpush2.bf16.msra.mxu0 0
    %646 = vmatprep.subr.bf16.mxu0 0
    %647 = vmatpush2.bf16.msra.mxu0 0
    %648 = vmatprep.subr.bf16.mxu0 0
    %649 = vmatpush2.bf16.msra.mxu0 0
    %650 = vmatprep.subr.bf16.mxu0 0
    %651 = vmatpush2.bf16.msra.mxu0 0
    %652 = vmatprep.subr.bf16.mxu0 0
    %653 = vmatpush2.bf16.msra.mxu0 0
    %654 = vmatprep.subr.bf16.mxu0 0
    %655 = vmatpush2.bf16.msra.mxu0 0
    %656 = vmatprep.subr.bf16.mxu0 0
    %657 = vmatpush2.bf16.msra.mxu0 0
    %658 = vmatprep.mubr.bf16.mxu0 0
    %659 = vmatmul.mubr.bf16.gmra.mxu0 %v621
    %v660 = vpop.f32.mrf.mxu0
    %v661 = vadd.f32 0.0, %v660
    %v662 = vpop.f32.mrf.mxu0
    %v663 = vpop.f32.mrf.mxu0
    %v664 = vpop.f32.mrf.mxu0
    %665 = vdwg.mxu0
    %666 = vst [vmem:[#allocation13] sm:$0xff] %v615
    %667 = vst [vmem:[#allocation13 + $0x8] sm:$0xff] %v661
    // Predicated region
    $region50: #{tpu_custom_call.1} parent=1 // pred_check
      _
    $region51: #{tpu_custom_call.1} parent=1 // pred_check_branch
      %669 = sbr.rel (0) target = $region53
    $region52: #{tpu_custom_call.1} parent=1 // pred_region
      %s671 = ssub.s32 256, 256
      %672 = vsyncadd [#allocation4], %s671
      %s673 = sshll.u32 [#allocation13], 4
      %s674 = int_to_ptr.vmem [resolvable:$true] %s673
      %679 = dma.vmem_to_hbm [thread:$0]  %s674, 256, %s6, [#allocation4], 128, 128, 8
    $region53: #{tpu_custom_call.1} parent=1 // pred_fallthru
      _
    // Predicated region
    $region54: #{tpu_custom_call.1} parent=1 // pred_check
      _
    $region55: #{tpu_custom_call.1} parent=1 // pred_check_branch
      %681 = sbr.rel (0) target = $region57
    $region56: #{tpu_custom_call.1} parent=1 // pred_region
      %682 = dma.done [#allocation4], 256
    $region57: #{tpu_custom_call.1} parent=1 // pred_fallthru
      _
    %683 = vsyncpa [#allocation3], 1
    %684 = vsyncpa [#allocation6], 1
    %685 = vsyncpa [#allocation9], 1
    %686 = vsyncpa [#allocation12], 1
    %687 = vsyncpa [#allocation4], 1

</llo_original>
